<compile_context>
chip_gen: v7x
topology: tpu7x:2x2x1
jax: 0.10.0
libtpu: 0.0.40
codegen_flags: <defaults>
</compile_context>

<pallas_src>
import jax
import jax.numpy as jnp
from jax.experimental import pallas as pl
from jax.experimental.pallas import tpu as pltpu


def _leaky_relu(x, slope=0.2):
    # One vmax per element (VALU is the binding slot) instead of cmp+select.
    return jnp.maximum(x, slope * x)


def generator_kernel(x_ref, w1_ref, b1_ref, w2_ref, b2_ref, w3_ref, b3_ref,
                     o_ref):
    k_in = w1_ref.shape[0]        # static (latent dim, tiny)

    x = x_ref[...].astype(jnp.float32)                       # (tb, k_in)

    # ---- Layer 1: Linear(k_in, 256). K is tiny (e.g. 2) -> unrolled VPU
    # broadcast multiply-adds; keeps the MXU free and x lane-layout trivial.
    h1 = x[:, 0:1] * w1_ref[0:1, :]                          # (tb,1)*(1,256)
    for k in range(1, k_in):
        h1 = h1 + x[:, k:k + 1] * w1_ref[k:k + 1, :]
    h1 = _leaky_relu(h1 + b1_ref[...])                       # (tb, 256) f32

    # ---- Layer 2: Linear(256, 512) — the dominant matmul, on the MXU.
    # bf16 operands, f32 accumulation -> full-rate MXU on v6e/v7x.
    h2 = jnp.dot(h1.astype(jnp.bfloat16), w2_ref[...],
                 preferred_element_type=jnp.float32)
    h2 = _leaky_relu(h2 + b2_ref[...])                       # (tb, 512) f32

    # ---- Layer 3: Linear(512, out_pad) also on the MXU (it has slack after
    # layer 2). Output columns are pre-padded to a 128-lane multiple, so this
    # is a single full-block, unmasked, lane-dense store.
    o_ref[...] = (jnp.dot(h2, w3_ref[...],
                          preferred_element_type=jnp.float32) + b3_ref[...])


def _num_tensorcores_per_chip():
    # v7x has 2 TensorCores per chip; v5e/v6e have 1. Robust best-effort probe.
    try:
        kind = jax.devices()[0].device_kind.lower()
        if "v7" in kind:
            return 2
    except Exception:
        pass
    return 1


def _pick_tile(batch, num_cores, cap=2048):
    """Single largest tile on 1-TC chips; exactly 2 tiles on 2-TC chips.

    Per-row f32 intermediates are ~3.5 KB, so tb up to `cap`=2048 stays well
    under the 16 MiB scoped-VMEM default on v5e (32 MiB on v6e/v7x).
    """
    if num_cores >= 2 and batch >= 16 and batch % 16 == 0:
        tb = batch // 2                      # 2 parallel grid steps (megacore)
        while tb > cap and tb % 2 == 0 and (tb // 2) % 8 == 0:
            tb //= 2
        return tb
    if batch <= cap:
        return batch                         # one grid step: zero step overhead
    for tb in (2048, 1024, 512, 256, 128, 64, 32, 16, 8):
        if batch % tb == 0:
            return tb
    return batch


def prepare_params(params):
    """One-time prep (hoisted out of the hot path): bf16 cast of w2 and
    padding of w3/b3 to a 128-lane-multiple output dim."""
    out_size = params["w3"].shape[1]
    n_pad = ((out_size + 127) // 128) * 128
    w3p = jnp.zeros((params["w3"].shape[0], n_pad), jnp.float32)
    w3p = w3p.at[:, :out_size].set(params["w3"].astype(jnp.float32))
    b3p = jnp.zeros((1, n_pad), jnp.float32)
    b3p = b3p.at[:, :out_size].set(params["b3"].astype(jnp.float32))
    return {
        "w1": params["w1"].astype(jnp.float32),
        "b1": params["b1"].astype(jnp.float32),
        "w2_bf16": params["w2"].astype(jnp.bfloat16),
        "b2": params["b2"].astype(jnp.float32),
        "w3_pad": w3p,
        "b3_pad": b3p,
        "out_size": out_size,
    }


def generator_forward(x, prepped, *, tb=None):
    """x: (B, input_size) float32. Returns (B, output_size) float32."""
    B, k_in = x.shape
    w1, b1 = prepped["w1"], prepped["b1"]
    w2, b2 = prepped["w2_bf16"], prepped["b2"]
    w3, b3 = prepped["w3_pad"], prepped["b3_pad"]
    out_size = prepped["out_size"]
    n_pad = w3.shape[1]
    assert w1.shape[0] == k_in

    if tb is None:
        tb = _pick_tile(B, _num_tensorcores_per_chip())
    assert B % tb == 0
    assert tb == B or tb % 8 == 0

    # Grid-invariant weight/bias blocks: same block index every step, so they
    # are fetched once and stay VMEM-resident (~0.6 MiB total).
    full = lambda a: pl.BlockSpec(a.shape, lambda i: (0, 0))

    out_pad = pl.pallas_call(
        generator_kernel,
        out_shape=jax.ShapeDtypeStruct((B, n_pad), jnp.float32),
        grid_spec=pltpu.PrefetchScalarGridSpec(
            num_scalar_prefetch=0,
            grid=(B // tb,),
            in_specs=[
                pl.BlockSpec((tb, k_in), lambda i: (i, 0)),   # x batch tile
                full(w1), full(b1),
                full(w2), full(b2),
                full(w3), full(b3),
            ],
            out_specs=pl.BlockSpec((tb, n_pad), lambda i: (i, 0)),
        ),
        compiler_params=pltpu.CompilerParams(
            dimension_semantics=("parallel",)),  # batch tiles -> both TCs (v7x)
    )(x, w1, b1, w2, b2, w3, b3)
    return out_pad[:, :out_size]


def init_params(key, input_size=2, output_size=2):
    """Deterministic init matching nn.Linear shapes (stored transposed)."""
    ks = jax.random.split(key, 6)

    def uniform(k, shape, fan_in):
        bound = 1.0 / jnp.sqrt(fan_in)
        return jax.random.uniform(k, shape, jnp.float32, -bound, bound)

    return {
        # Linear(input_size, 256): weight stored as (in, out); bias (1, out)
        "w1": uniform(ks[0], (input_size, 256), input_size),
        "b1": uniform(ks[1], (1, 256), input_size),
        # Linear(256, 512)
        "w2": uniform(ks[2], (256, 512), 256),
        "b2": uniform(ks[3], (1, 512), 256),
        # Linear(512, output_size)
        "w3": uniform(ks[4], (512, output_size), 512),
        "b3": uniform(ks[5], (1, output_size), 512),
    }


def reference_forward(x, p):
    h1 = x @ p["w1"] + p["b1"]
    h1 = jnp.where(h1 > 0, h1, 0.2 * h1)
    h2 = h1 @ p["w2"] + p["b2"]
    h2 = jnp.where(h2 > 0, h2, 0.2 * h2)
    return h2 @ p["w3"] + p["b3"]


if __name__ == "__main__":
    key = jax.random.PRNGKey(0)
    pkey, xkey = jax.random.split(key)

    input_size, output_size, B = 2, 2, 64
    params = init_params(pkey, input_size, output_size)
    prepped = prepare_params(params)
    x = jax.random.normal(xkey, (B, input_size), jnp.float32)

    out = generator_forward(x, prepped)
    out = jax.block_until_ready(out)

    ref = reference_forward(x, params)
    assert out.shape == (B, output_size)
    # Layer 2 intentionally uses bf16 operands (f32 accumulation), so allow
    # ~2e-2 tolerance vs. the pure-f32 reference.
    err = jnp.max(jnp.abs(out - ref))
    assert jnp.allclose(out, ref, atol=2e-2, rtol=2e-2), f"mismatch: max err {err}"
    print("KERNEL_OK")
</pallas_src>

<mosaic_0001>
module attributes {stable_mosaic.version = 11 : i64} {
  func.func @generator_kernel(%arg0: i32, %arg1: memref<64x2xf32, #tpu.memory_space<vmem>>, %arg2: memref<2x256xf32, #tpu.memory_space<vmem>>, %arg3: memref<1x256xf32, #tpu.memory_space<vmem>>, %arg4: memref<256x512xbf16, #tpu.memory_space<vmem>>, %arg5: memref<1x512xf32, #tpu.memory_space<vmem>>, %arg6: memref<512x128xf32, #tpu.memory_space<vmem>>, %arg7: memref<1x128xf32, #tpu.memory_space<vmem>>, %arg8: memref<64x128xf32, #tpu.memory_space<vmem>>) attributes {dimension_semantics = [#tpu.dimension_semantics<parallel>], iteration_bounds = array<i64: 1>, scalar_prefetch = 0 : i64, scratch_operands = 0 : i64, tpu.core_type = #tpu.core_type<tc>, window_params = [{transform_indices = @transform_0, window_bounds = array<i64: 64, 2>}, {pipeline_mode = #tpu.pipeline_mode<synchronous>, transform_indices = @transform_1, window_bounds = array<i64: 2, 256>}, {pipeline_mode = #tpu.pipeline_mode<synchronous>, transform_indices = @transform_2, window_bounds = array<i64: 1, 256>}, {pipeline_mode = #tpu.pipeline_mode<synchronous>, transform_indices = @transform_3, window_bounds = array<i64: 256, 512>}, {pipeline_mode = #tpu.pipeline_mode<synchronous>, transform_indices = @transform_4, window_bounds = array<i64: 1, 512>}, {pipeline_mode = #tpu.pipeline_mode<synchronous>, transform_indices = @transform_5, window_bounds = array<i64: 512, 128>}, {pipeline_mode = #tpu.pipeline_mode<synchronous>, transform_indices = @transform_6, window_bounds = array<i64: 1, 128>}, {transform_indices = @transform_7, window_bounds = array<i64: 64, 128>}]} {
    %c0 = arith.constant 0 : index
    %c0_0 = arith.constant 0 : index
    %0 = vector.load %arg1[%c0, %c0_0] : memref<64x2xf32, #tpu.memory_space<vmem>>, vector<64x2xf32>
    %1 = vector.extract_strided_slice %0 {offsets = [0, 0], sizes = [64, 1], strides = [1, 1]} : vector<64x2xf32> to vector<64x1xf32>
    %c0_1 = arith.constant 0 : index
    %c0_2 = arith.constant 0 : index
    %2 = vector.load %arg2[%c0_1, %c0_2] : memref<2x256xf32, #tpu.memory_space<vmem>>, vector<1x256xf32>
    %3 = vector.broadcast %1 : vector<64x1xf32> to vector<64x256xf32>
    %4 = vector.broadcast %2 : vector<1x256xf32> to vector<64x256xf32>
    %5 = arith.mulf %3, %4 : vector<64x256xf32>
    %6 = vector.extract_strided_slice %0 {offsets = [0, 1], sizes = [64, 1], strides = [1, 1]} : vector<64x2xf32> to vector<64x1xf32>
    %c1 = arith.constant 1 : index
    %c0_3 = arith.constant 0 : index
    %7 = vector.load %arg2[%c1, %c0_3] : memref<2x256xf32, #tpu.memory_space<vmem>>, vector<1x256xf32>
    %8 = vector.broadcast %6 : vector<64x1xf32> to vector<64x256xf32>
    %9 = vector.broadcast %7 : vector<1x256xf32> to vector<64x256xf32>
    %10 = arith.mulf %8, %9 : vector<64x256xf32>
    %11 = arith.addf %5, %10 : vector<64x256xf32>
    %c0_4 = arith.constant 0 : index
    %c0_5 = arith.constant 0 : index
    %12 = vector.load %arg3[%c0_4, %c0_5] : memref<1x256xf32, #tpu.memory_space<vmem>>, vector<1x256xf32>
    %13 = vector.broadcast %12 : vector<1x256xf32> to vector<64x256xf32>
    %14 = arith.addf %11, %13 : vector<64x256xf32>
    %cst = arith.constant 2.000000e-01 : f32
    %15 = vector.broadcast %cst : f32 to vector<64x256xf32>
    %16 = arith.mulf %15, %14 : vector<64x256xf32>
    %17 = arith.maximumf %14, %16 : vector<64x256xf32>
    %18 = arith.truncf %17 : vector<64x256xf32> to vector<64x256xbf16>
    %c0_6 = arith.constant 0 : index
    %c0_7 = arith.constant 0 : index
    %19 = vector.load %arg4[%c0_6, %c0_7] : memref<256x512xbf16, #tpu.memory_space<vmem>>, vector<256x512xbf16>
    %cst_8 = arith.constant dense<0.000000e+00> : vector<64x512xf32>
    %20 = tpu.matmul %18, %19, %cst_8 {dimension_numbers = #tpu.dot_dimension_numbers<[1], [0], [0], [1], [0, 0, 1, 1], [], []>} : vector<64x256xbf16>, vector<256x512xbf16>, vector<64x512xf32> -> vector<64x512xf32>
    %c0_9 = arith.constant 0 : index
    %c0_10 = arith.constant 0 : index
    %21 = vector.load %arg5[%c0_9, %c0_10] : memref<1x512xf32, #tpu.memory_space<vmem>>, vector<1x512xf32>
    %22 = vector.broadcast %21 : vector<1x512xf32> to vector<64x512xf32>
    %23 = arith.addf %20, %22 : vector<64x512xf32>
    %cst_11 = arith.constant 2.000000e-01 : f32
    %24 = vector.broadcast %cst_11 : f32 to vector<64x512xf32>
    %25 = arith.mulf %24, %23 : vector<64x512xf32>
    %26 = arith.maximumf %23, %25 : vector<64x512xf32>
    %c0_12 = arith.constant 0 : index
    %c0_13 = arith.constant 0 : index
    %27 = vector.load %arg6[%c0_12, %c0_13] : memref<512x128xf32, #tpu.memory_space<vmem>>, vector<512x128xf32>
    %cst_14 = arith.constant dense<0.000000e+00> : vector<64x128xf32>
    %28 = tpu.matmul %26, %27, %cst_14 {dimension_numbers = #tpu.dot_dimension_numbers<[1], [0], [0], [1], [0, 0, 1, 1], [], []>} : vector<64x512xf32>, vector<512x128xf32>, vector<64x128xf32> -> vector<64x128xf32>
    %c0_15 = arith.constant 0 : index
    %c0_16 = arith.constant 0 : index
    %29 = vector.load %arg7[%c0_15, %c0_16] : memref<1x128xf32, #tpu.memory_space<vmem>>, vector<1x128xf32>
    %30 = vector.broadcast %29 : vector<1x128xf32> to vector<64x128xf32>
    %31 = arith.addf %28, %30 : vector<64x128xf32>
    %c0_17 = arith.constant 0 : index
    %c0_18 = arith.constant 0 : index
    %32 = vector.load %arg8[%c0_17, %c0_18] : memref<64x128xf32, #tpu.memory_space<vmem>>, vector<64x128xf32>
    tpu.vector_store %arg8[%c0_17, %c0_18], %31 {strides = array<i32>} : memref<64x128xf32, #tpu.memory_space<vmem>>, vector<64x128xf32>,
    return
  }
  func.func @transform_0(%arg0: i32) -> (i32, i32) {
    %c0_i32 = arith.constant 0 : i32
    %c0_i32_0 = arith.constant 0 : i32
    return %arg0, %c0_i32 : i32, i32
  }
  func.func @transform_1(%arg0: i32) -> (i32, i32) {
    %c0_i32 = arith.constant 0 : i32
    %c0_i32_0 = arith.constant 0 : i32
    %c0_i32_1 = arith.constant 0 : i32
    return %c0_i32, %c0_i32_0 : i32, i32
  }
  func.func @transform_2(%arg0: i32) -> (i32, i32) {
    %c0_i32 = arith.constant 0 : i32
    %c0_i32_0 = arith.constant 0 : i32
    %c0_i32_1 = arith.constant 0 : i32
    return %c0_i32, %c0_i32_0 : i32, i32
  }
  func.func @transform_3(%arg0: i32) -> (i32, i32) {
    %c0_i32 = arith.constant 0 : i32
    %c0_i32_0 = arith.constant 0 : i32
    %c0_i32_1 = arith.constant 0 : i32
    return %c0_i32, %c0_i32_0 : i32, i32
  }
  func.func @transform_4(%arg0: i32) -> (i32, i32) {
    %c0_i32 = arith.constant 0 : i32
    %c0_i32_0 = arith.constant 0 : i32
    %c0_i32_1 = arith.constant 0 : i32
    return %c0_i32, %c0_i32_0 : i32, i32
  }
  func.func @transform_5(%arg0: i32) -> (i32, i32) {
    %c0_i32 = arith.constant 0 : i32
    %c0_i32_0 = arith.constant 0 : i32
    %c0_i32_1 = arith.constant 0 : i32
    return %c0_i32, %c0_i32_0 : i32, i32
  }
  func.func @transform_6(%arg0: i32) -> (i32, i32) {
    %c0_i32 = arith.constant 0 : i32
    %c0_i32_0 = arith.constant 0 : i32
    %c0_i32_1 = arith.constant 0 : i32
    return %c0_i32, %c0_i32_0 : i32, i32
  }
  func.func @transform_7(%arg0: i32) -> (i32, i32) {
    %c0_i32 = arith.constant 0 : i32
    %c0_i32_0 = arith.constant 0 : i32
    return %arg0, %c0_i32 : i32, i32
  }
}

</mosaic_0001>

<llo_original>
// kernel: tpu_custom_call.1
$region0: #{tpu_custom_call.1}
  #allocation0 [shape = 'u32[]', space=smem, size = 0x4, offset = 0x4, fixed_abs, tag = 'smem constant byte address 0x4 - core index']
  #allocation1 [shape = 'u32[144,128]{1,0:T(1,128)}', space=vmem, size = 0x12000, scoped, tag = 'internal scratch']
  %s0 = inlined_call_operand.vmem [shape: f32[64,2], index: 0, kind: input, shape index: {}]
  %s1 = inlined_call_operand.vmem [shape: f32[2,256], index: 1, kind: input, shape index: {}]
  %s2 = inlined_call_operand.vmem [shape: f32[1,256], index: 2, kind: input, shape index: {}]
  %s3 = inlined_call_operand.hbm [shape: bf16[256,512], index: 3, kind: input, shape index: {}]
  %s4 = inlined_call_operand.vmem [shape: f32[1,512], index: 4, kind: input, shape index: {}]
  %s5 = inlined_call_operand.hbm [shape: f32[512,128], index: 5, kind: input, shape index: {}]
  %s6 = inlined_call_operand.vmem [shape: f32[1,128], index: 6, kind: input, shape index: {}]
  %s7 = inlined_call_operand.hbm [shape: f32[64,128], index: 7, kind: output, shape index: {}]
  %s8 = sld [smem:[#allocation0]]
  $region46: #{tpu_custom_call.1} parent=0
    _
  %s10 = ssub.s32 1, %s8
  %s11 = scalar_select 0, %s10, %s8
  $region1: #{tpu_custom_call.1} parent=0
    #allocation2 [shape = 'u8[262144]{0}', space=vmem, size = 0x40000, scoped, tag = 'input window, operand 3, single buffered']
    #allocation3 [shape = 's32[1]{0}', space=sflag, size = 0x4, scoped, tag = 'scoped memory for tpu_custom_call.1']
    #allocation4 [shape = 's32[1]{0}', space=sflag, size = 0x4, scoped, tag = 'scoped memory for tpu_custom_call.1']
    #allocation5 [shape = 'u8[262144]{0}', space=vmem, size = 0x40000, scoped, tag = 'input window, operand 5, single buffered']
    #allocation6 [shape = 's32[1]{0}', space=sflag, size = 0x4, scoped, tag = 'scoped memory for tpu_custom_call.1']
    #allocation7 [shape = 'u8[32768]{0}', space=vmem, size = 0x8000, scoped, tag = 'output window, operand 0, single buffered']
    %12 = vsyncpa [#allocation3], 0
    %13 = vsyncpa [#allocation6], 0
    %14 = vsyncpa [#allocation4], 0
    // Predicated region
    $region2: #{tpu_custom_call.1} parent=1 // pred_check
      _
    $region3: #{tpu_custom_call.1} parent=1 // pred_check_branch
      %16 = sbr.rel (0) target = $region5
    $region4: #{tpu_custom_call.1} parent=1 // pred_region
      _
    $region5: #{tpu_custom_call.1} parent=1 // pred_fallthru
      _
    // Predicated region
    $region6: #{tpu_custom_call.1} parent=1 // pred_check
      _
    $region7: #{tpu_custom_call.1} parent=1 // pred_check_branch
      %18 = sbr.rel (0) target = $region9
    $region8: #{tpu_custom_call.1} parent=1 // pred_region
      _
    $region9: #{tpu_custom_call.1} parent=1 // pred_fallthru
      _
    // Predicated region
    $region10: #{tpu_custom_call.1} parent=1 // pred_check
      _
    $region11: #{tpu_custom_call.1} parent=1 // pred_check_branch
      %20 = sbr.rel (0) target = $region13
    $region12: #{tpu_custom_call.1} parent=1 // pred_region
      _
    $region13: #{tpu_custom_call.1} parent=1 // pred_fallthru
      _
    // Predicated region
    $region14: #{tpu_custom_call.1} parent=1 // pred_check
      _
    $region15: #{tpu_custom_call.1} parent=1 // pred_check_branch
      %22 = sbr.rel (0) target = $region17
    $region16: #{tpu_custom_call.1} parent=1 // pred_region
      %s24 = ssub.s32 8192, 8192
      %25 = vsyncadd [#allocation3], %s24
      %s26 = sshll.u32 [#allocation2], 4
      %s27 = int_to_ptr.vmem [resolvable:$true] %s26
      %32 = dma.hbm_to_vmem [thread:$0]  %s3, 8192, %s27, [#allocation3], 256, 256, 16
    $region17: #{tpu_custom_call.1} parent=1 // pred_fallthru
      _
    // Predicated region
    $region18: #{tpu_custom_call.1} parent=1 // pred_check
      _
    $region19: #{tpu_custom_call.1} parent=1 // pred_check_branch
      %34 = sbr.rel (0) target = $region21
    $region20: #{tpu_custom_call.1} parent=1 // pred_region
      _
    $region21: #{tpu_custom_call.1} parent=1 // pred_fallthru
      _
    // Predicated region
    $region22: #{tpu_custom_call.1} parent=1 // pred_check
      _
    $region23: #{tpu_custom_call.1} parent=1 // pred_check_branch
      %36 = sbr.rel (0) target = $region25
    $region24: #{tpu_custom_call.1} parent=1 // pred_region
      %s38 = ssub.s32 8192, 8192
      %39 = vsyncadd [#allocation6], %s38
      %s40 = sshll.u32 [#allocation5], 4
      %s41 = int_to_ptr.vmem [resolvable:$true] %s40
      %46 = dma.hbm_to_vmem [thread:$0]  %s5, 8192, %s41, [#allocation6], 128, 128, 8
    $region25: #{tpu_custom_call.1} parent=1 // pred_fallthru
      _
    // Predicated region
    $region26: #{tpu_custom_call.1} parent=1 // pred_check
      _
    $region27: #{tpu_custom_call.1} parent=1 // pred_check_branch
      %48 = sbr.rel (0) target = $region29
    $region28: #{tpu_custom_call.1} parent=1 // pred_region
      _
    $region29: #{tpu_custom_call.1} parent=1 // pred_fallthru
      _
    // Predicated region
    $region30: #{tpu_custom_call.1} parent=1 // pred_check
      _
    $region31: #{tpu_custom_call.1} parent=1 // pred_check_branch
      %50 = sbr.rel (0) target = $region33
    $region32: #{tpu_custom_call.1} parent=1 // pred_region
      %51 = dma.done [#allocation3], 8192
    $region33: #{tpu_custom_call.1} parent=1 // pred_fallthru
      _
    // Predicated region
    $region34: #{tpu_custom_call.1} parent=1 // pred_check
      _
    $region35: #{tpu_custom_call.1} parent=1 // pred_check_branch
      %53 = sbr.rel (0) target = $region37
    $region36: #{tpu_custom_call.1} parent=1 // pred_region
      %54 = dma.done [#allocation6], 8192
    $region37: #{tpu_custom_call.1} parent=1 // pred_fallthru
      _
    %v55 = vld [vmem:[%s0] sm:$0xff]
    %v56 = vld [vmem:[%s0 + $0x8] sm:$0xff]
    %v57 = vld [vmem:[%s0 + $0x10] sm:$0xff]
    %v58 = vld [vmem:[%s0 + $0x18] sm:$0xff]
    %v59 = vld [vmem:[%s0 + $0x20] sm:$0xff]
    %v60 = vld [vmem:[%s0 + $0x28] sm:$0xff]
    %v61 = vld [vmem:[%s0 + $0x30] sm:$0xff]
    %v62 = vld [vmem:[%s0 + $0x38] sm:$0xff]
    %v63 = vld [vmem:[%s1] ss:$2 sm:$0x3]
    %65 = vset.pattern.permute.xlu0 0
    %66 = vperm.xlu0 %65, %v55
    %v67 = vpop.permute.xlu0 %66
    %70 = vset.pattern.permute.xlu0 0
    %71 = vperm.xlu0 %70, %v56
    %v72 = vpop.permute.xlu0 %71
    %75 = vset.pattern.permute.xlu0 0
    %76 = vperm.xlu0 %75, %v57
    %v77 = vpop.permute.xlu0 %76
    %80 = vset.pattern.permute.xlu0 0
    %81 = vperm.xlu0 %80, %v58
    %v82 = vpop.permute.xlu0 %81
    %85 = vset.pattern.permute.xlu0 0
    %86 = vperm.xlu0 %85, %v59
    %v87 = vpop.permute.xlu0 %86
    %90 = vset.pattern.permute.xlu0 0
    %91 = vperm.xlu0 %90, %v60
    %v92 = vpop.permute.xlu0 %91
    %95 = vset.pattern.permute.xlu0 0
    %96 = vperm.xlu0 %95, %v61
    %v97 = vpop.permute.xlu0 %96
    %100 = vset.pattern.permute.xlu0 0
    %101 = vperm.xlu0 %100, %v62
    %v102 = vpop.permute.xlu0 %101
    %v105 = vlaneseq
    %v106 = vshrl.u32 %v105, 7
    %v107 = vsub.s32 0, %v106
    %v108 = vrot.slane %v63, %v107
    %v109 = vlaneseq
    %v110 = vshrl.u32 %v109, 7
    %v111 = vsub.s32 1, %v110
    %v112 = vrot.slane %v63, %v111
    %v115 = vmul.f32 %v67, %v108
    %v116 = vmul.f32 %v67, %v112
    %v117 = vmul.f32 %v72, %v108
    %v118 = vmul.f32 %v72, %v112
    %v119 = vmul.f32 %v77, %v108
    %v120 = vmul.f32 %v77, %v112
    %v121 = vmul.f32 %v82, %v108
    %v122 = vmul.f32 %v82, %v112
    %v123 = vmul.f32 %v87, %v108
    %v124 = vmul.f32 %v87, %v112
    %v125 = vmul.f32 %v92, %v108
    %v126 = vmul.f32 %v92, %v112
    %v127 = vmul.f32 %v97, %v108
    %v128 = vmul.f32 %v97, %v112
    %v129 = vmul.f32 %v102, %v108
    %v130 = vmul.f32 %v102, %v112
    %s131 = scalar_lea.vmem %s1, 1
    %v132 = vld [vmem:[%s131] ss:$2 sm:$0x3]
    %133 = vset.pattern.permute.xlu0 1
    %134 = vperm.xlu0 %133, %v55
    %v135 = vpop.permute.xlu0 %134
    %137 = vset.pattern.permute.xlu0 1
    %138 = vperm.xlu0 %137, %v56
    %v139 = vpop.permute.xlu0 %138
    %141 = vset.pattern.permute.xlu0 1
    %142 = vperm.xlu0 %141, %v57
    %v143 = vpop.permute.xlu0 %142
    %145 = vset.pattern.permute.xlu0 1
    %146 = vperm.xlu0 %145, %v58
    %v147 = vpop.permute.xlu0 %146
    %149 = vset.pattern.permute.xlu0 1
    %150 = vperm.xlu0 %149, %v59
    %v151 = vpop.permute.xlu0 %150
    %153 = vset.pattern.permute.xlu0 1
    %154 = vperm.xlu0 %153, %v60
    %v155 = vpop.permute.xlu0 %154
    %157 = vset.pattern.permute.xlu0 1
    %158 = vperm.xlu0 %157, %v61
    %v159 = vpop.permute.xlu0 %158
    %161 = vset.pattern.permute.xlu0 1
    %162 = vperm.xlu0 %161, %v62
    %v163 = vpop.permute.xlu0 %162
    %v166 = vlaneseq
    %v167 = vshrl.u32 %v166, 7
    %v168 = vsub.s32 0, %v167
    %v169 = vrot.slane %v132, %v168
    %v170 = vlaneseq
    %v171 = vshrl.u32 %v170, 7
    %v172 = vsub.s32 1, %v171
    %v173 = vrot.slane %v132, %v172
    %v176 = vmul.f32 %v135, %v169
    %v177 = vmul.f32 %v135, %v173
    %v178 = vmul.f32 %v139, %v169
    %v179 = vmul.f32 %v139, %v173
    %v180 = vmul.f32 %v143, %v169
    %v181 = vmul.f32 %v143, %v173
    %v182 = vmul.f32 %v147, %v169
    %v183 = vmul.f32 %v147, %v173
    %v184 = vmul.f32 %v151, %v169
    %v185 = vmul.f32 %v151, %v173
    %v186 = vmul.f32 %v155, %v169
    %v187 = vmul.f32 %v155, %v173
    %v188 = vmul.f32 %v159, %v169
    %v189 = vmul.f32 %v159, %v173
    %v190 = vmul.f32 %v163, %v169
    %v191 = vmul.f32 %v163, %v173
    %v192 = vadd.f32 %v115, %v176
    %v193 = vadd.f32 %v116, %v177
    %v194 = vadd.f32 %v117, %v178
    %v195 = vadd.f32 %v118, %v179
    %v196 = vadd.f32 %v119, %v180
    %v197 = vadd.f32 %v120, %v181
    %v198 = vadd.f32 %v121, %v182
    %v199 = vadd.f32 %v122, %v183
    %v200 = vadd.f32 %v123, %v184
    %v201 = vadd.f32 %v124, %v185
    %v202 = vadd.f32 %v125, %v186
    %v203 = vadd.f32 %v126, %v187
    %v204 = vadd.f32 %v127, %v188
    %v205 = vadd.f32 %v128, %v189
    %v206 = vadd.f32 %v129, %v190
    %v207 = vadd.f32 %v130, %v191
    %v208 = vld [vmem:[%s2] sm:$0x3]
    %v210 = vlaneseq
    %v211 = vshrl.u32 %v210, 7
    %v212 = vsub.s32 0, %v211
    %v213 = vrot.slane %v208, %v212
    %v214 = vlaneseq
    %v215 = vshrl.u32 %v214, 7
    %v216 = vsub.s32 1, %v215
    %v217 = vrot.slane %v208, %v216
    %v220 = vadd.f32 %v192, %v213
    %v221 = vadd.f32 %v193, %v217
    %v222 = vadd.f32 %v194, %v213
    %v223 = vadd.f32 %v195, %v217
    %v224 = vadd.f32 %v196, %v213
    %v225 = vadd.f32 %v197, %v217
    %v226 = vadd.f32 %v198, %v213
    %v227 = vadd.f32 %v199, %v217
    %v228 = vadd.f32 %v200, %v213
    %v229 = vadd.f32 %v201, %v217
    %v230 = vadd.f32 %v202, %v213
    %v231 = vadd.f32 %v203, %v217
    %v232 = vadd.f32 %v204, %v213
    %v233 = vadd.f32 %v205, %v217
    %v234 = vadd.f32 %v206, %v213
    %v235 = vadd.f32 %v207, %v217
    %v236 = vmul.f32 %v220, 0.2
    %v237 = vmul.f32 %v221, 0.2
    %v238 = vmul.f32 %v222, 0.2
    %v239 = vmul.f32 %v223, 0.2
    %v240 = vmul.f32 %v224, 0.2
    %v241 = vmul.f32 %v225, 0.2
    %v242 = vmul.f32 %v226, 0.2
    %v243 = vmul.f32 %v227, 0.2
    %v244 = vmul.f32 %v228, 0.2
    %v245 = vmul.f32 %v229, 0.2
    %v246 = vmul.f32 %v230, 0.2
    %v247 = vmul.f32 %v231, 0.2
    %v248 = vmul.f32 %v232, 0.2
    %v249 = vmul.f32 %v233, 0.2
    %v250 = vmul.f32 %v234, 0.2
    %v251 = vmul.f32 %v235, 0.2
    %v252 = vmax.f32 %v220, %v236
    %v253 = vmax.f32 %v221, %v237
    %v254 = vmax.f32 %v222, %v238
    %v255 = vmax.f32 %v223, %v239
    %v256 = vmax.f32 %v224, %v240
    %v257 = vmax.f32 %v225, %v241
    %v258 = vmax.f32 %v226, %v242
    %v259 = vmax.f32 %v227, %v243
    %v260 = vmax.f32 %v228, %v244
    %v261 = vmax.f32 %v229, %v245
    %v262 = vmax.f32 %v230, %v246
    %v263 = vmax.f32 %v231, %v247
    %v264 = vmax.f32 %v232, %v248
    %v265 = vmax.f32 %v233, %v249
    %v266 = vmax.f32 %v234, %v250
    %v267 = vmax.f32 %v235, %v251
    %v268 = vpack.c.bf16 %v254, %v252
    %v269 = vpack.c.bf16 %v255, %v253
    %v270 = vpack.c.bf16 %v258, %v256
    %v271 = vpack.c.bf16 %v259, %v257
    %v272 = vpack.c.bf16 %v262, %v260
    %v273 = vpack.c.bf16 %v263, %v261
    %v274 = vpack.c.bf16 %v266, %v264
    %v275 = vpack.c.bf16 %v267, %v265
    %v276 = vld [vmem:[#allocation2] sm:$0xff]
    %v277 = vld [vmem:[#allocation2 + $0x8] sm:$0xff]
    %v278 = vld [vmem:[#allocation2 + $0x10] sm:$0xff]
    %v279 = vld [vmem:[#allocation2 + $0x18] sm:$0xff]
    %v280 = vld [vmem:[#allocation2 + $0x20] sm:$0xff]
    %v281 = vld [vmem:[#allocation2 + $0x28] sm:$0xff]
    %v282 = vld [vmem:[#allocation2 + $0x30] sm:$0xff]
    %v283 = vld [vmem:[#allocation2 + $0x38] sm:$0xff]
    %v284 = vld [vmem:[#allocation2 + $0x40] sm:$0xff]
    %v285 = vld [vmem:[#allocation2 + $0x48] sm:$0xff]
    %v286 = vld [vmem:[#allocation2 + $0x50] sm:$0xff]
    %v287 = vld [vmem:[#allocation2 + $0x58] sm:$0xff]
    %v288 = vld [vmem:[#allocation2 + $0x60] sm:$0xff]
    %v289 = vld [vmem:[#allocation2 + $0x68] sm:$0xff]
    %v290 = vld [vmem:[#allocation2 + $0x70] sm:$0xff]
    %v291 = vld [vmem:[#allocation2 + $0x78] sm:$0xff]
    %v292 = vld [vmem:[#allocation2 + $0x80] sm:$0xff]
    %v293 = vld [vmem:[#allocation2 + $0x88] sm:$0xff]
    %v294 = vld [vmem:[#allocation2 + $0x90] sm:$0xff]
    %v295 = vld [vmem:[#allocation2 + $0x98] sm:$0xff]
    %v296 = vld [vmem:[#allocation2 + $0xa0] sm:$0xff]
    %v297 = vld [vmem:[#allocation2 + $0xa8] sm:$0xff]
    %v298 = vld [vmem:[#allocation2 + $0xb0] sm:$0xff]
    %v299 = vld [vmem:[#allocation2 + $0xb8] sm:$0xff]
    %v300 = vld [vmem:[#allocation2 + $0xc0] sm:$0xff]
    %v301 = vld [vmem:[#allocation2 + $0xc8] sm:$0xff]
    %v302 = vld [vmem:[#allocation2 + $0xd0] sm:$0xff]
    %v303 = vld [vmem:[#allocation2 + $0xd8] sm:$0xff]
    %v304 = vld [vmem:[#allocation2 + $0xe0] sm:$0xff]
    %v305 = vld [vmem:[#allocation2 + $0xe8] sm:$0xff]
    %v306 = vld [vmem:[#allocation2 + $0xf0] sm:$0xff]
    %v307 = vld [vmem:[#allocation2 + $0xf8] sm:$0xff]
    %v308 = vld [vmem:[#allocation2 + $0x100] sm:$0xff]
    %v309 = vld [vmem:[#allocation2 + $0x108] sm:$0xff]
    %v310 = vld [vmem:[#allocation2 + $0x110] sm:$0xff]
    %v311 = vld [vmem:[#allocation2 + $0x118] sm:$0xff]
    %v312 = vld [vmem:[#allocation2 + $0x120] sm:$0xff]
    %v313 = vld [vmem:[#allocation2 + $0x128] sm:$0xff]
    %v314 = vld [vmem:[#allocation2 + $0x130] sm:$0xff]
    %v315 = vld [vmem:[#allocation2 + $0x138] sm:$0xff]
    %v316 = vld [vmem:[#allocation2 + $0x140] sm:$0xff]
    %v317 = vld [vmem:[#allocation2 + $0x148] sm:$0xff]
    %v318 = vld [vmem:[#allocation2 + $0x150] sm:$0xff]
    %v319 = vld [vmem:[#allocation2 + $0x158] sm:$0xff]
    %v320 = vld [vmem:[#allocation2 + $0x160] sm:$0xff]
    %v321 = vld [vmem:[#allocation2 + $0x168] sm:$0xff]
    %v322 = vld [vmem:[#allocation2 + $0x170] sm:$0xff]
    %v323 = vld [vmem:[#allocation2 + $0x178] sm:$0xff]
    %v324 = vld [vmem:[#allocation2 + $0x180] sm:$0xff]
    %v325 = vld [vmem:[#allocation2 + $0x188] sm:$0xff]
    %v326 = vld [vmem:[#allocation2 + $0x190] sm:$0xff]
    %v327 = vld [vmem:[#allocation2 + $0x198] sm:$0xff]
    %v328 = vld [vmem:[#allocation2 + $0x1a0] sm:$0xff]
    %v329 = vld [vmem:[#allocation2 + $0x1a8] sm:$0xff]
    %v330 = vld [vmem:[#allocation2 + $0x1b0] sm:$0xff]
    %v331 = vld [vmem:[#allocation2 + $0x1b8] sm:$0xff]
    %v332 = vld [vmem:[#allocation2 + $0x1c0] sm:$0xff]
    %v333 = vld [vmem:[#allocation2 + $0x1c8] sm:$0xff]
    %v334 = vld [vmem:[#allocation2 + $0x1d0] sm:$0xff]
    %v335 = vld [vmem:[#allocation2 + $0x1d8] sm:$0xff]
    %v336 = vld [vmem:[#allocation2 + $0x1e0] sm:$0xff]
    %v337 = vld [vmem:[#allocation2 + $0x1e8] sm:$0xff]
    %v338 = vld [vmem:[#allocation2 + $0x1f0] sm:$0xff]
    %v339 = vld [vmem:[#allocation2 + $0x1f8] sm:$0xff]
    %v340 = vld [vmem:[%s4] sm:$0xf]
    %v342 = vlaneseq
    %v343 = vshrl.u32 %v342, 7
    %v344 = vsub.s32 0, %v343
    %v345 = vrot.slane %v340, %v344
    %v346 = vlaneseq
    %v347 = vshrl.u32 %v346, 7
    %v348 = vsub.s32 1, %v347
    %v349 = vrot.slane %v340, %v348
    %v350 = vlaneseq
    %v351 = vshrl.u32 %v350, 7
    %v352 = vsub.s32 2, %v351
    %v353 = vrot.slane %v340, %v352
    %v354 = vlaneseq
    %v355 = vshrl.u32 %v354, 7
    %v356 = vsub.s32 3, %v355
    %v357 = vrot.slane %v340, %v356
    %v426 = vunpack.c.l.b16 %v276
    %v427 = vunpack.c.h.b16 %v276
    %v428 = vunpack.c.l.b16 %v277
    %v429 = vunpack.c.h.b16 %v277
    %v430 = vunpack.c.l.b16 %v278
    %v431 = vunpack.c.h.b16 %v278
    %v432 = vunpack.c.l.b16 %v279
    %v433 = vunpack.c.h.b16 %v279
    %v434 = vunpack.c.l.b16 %v280
    %v435 = vunpack.c.h.b16 %v280
    %v436 = vunpack.c.l.b16 %v281
    %v437 = vunpack.c.h.b16 %v281
    %v438 = vunpack.c.l.b16 %v282
    %v439 = vunpack.c.h.b16 %v282
    %v440 = vunpack.c.l.b16 %v283
    %v441 = vunpack.c.h.b16 %v283
    %v442 = vunpack.c.l.b16 %v284
    %v443 = vunpack.c.h.b16 %v284
    %v444 = vunpack.c.l.b16 %v285
    %v445 = vunpack.c.h.b16 %v285
    %v446 = vunpack.c.l.b16 %v286
    %v447 = vunpack.c.h.b16 %v286
    %v448 = vunpack.c.l.b16 %v287
    %v449 = vunpack.c.h.b16 %v287
    %v450 = vunpack.c.l.b16 %v288
    %v451 = vunpack.c.h.b16 %v288
    %v452 = vunpack.c.l.b16 %v289
    %v453 = vunpack.c.h.b16 %v289
    %v454 = vunpack.c.l.b16 %v290
    %v455 = vunpack.c.h.b16 %v290
    %v456 = vunpack.c.l.b16 %v291
    %v457 = vunpack.c.h.b16 %v291
    %v458 = vunpack.c.l.b16 %v292
    %v459 = vunpack.c.h.b16 %v292
    %v460 = vunpack.c.l.b16 %v293
    %v461 = vunpack.c.h.b16 %v293
    %v462 = vunpack.c.l.b16 %v294
    %v463 = vunpack.c.h.b16 %v294
    %v464 = vunpack.c.l.b16 %v295
    %v465 = vunpack.c.h.b16 %v295
    %v466 = vunpack.c.l.b16 %v296
    %v467 = vunpack.c.h.b16 %v296
    %v468 = vunpack.c.l.b16 %v297
    %v469 = vunpack.c.h.b16 %v297
    %v470 = vunpack.c.l.b16 %v298
    %v471 = vunpack.c.h.b16 %v298
    %v472 = vunpack.c.l.b16 %v299
    %v473 = vunpack.c.h.b16 %v299
    %v474 = vunpack.c.l.b16 %v300
    %v475 = vunpack.c.h.b16 %v300
    %v476 = vunpack.c.l.b16 %v301
    %v477 = vunpack.c.h.b16 %v301
    %v478 = vunpack.c.l.b16 %v302
    %v479 = vunpack.c.h.b16 %v302
    %v480 = vunpack.c.l.b16 %v303
    %v481 = vunpack.c.h.b16 %v303
    %v482 = vunpack.c.l.b16 %v304
    %v483 = vunpack.c.h.b16 %v304
    %v484 = vunpack.c.l.b16 %v305
    %v485 = vunpack.c.h.b16 %v305
    %v486 = vunpack.c.l.b16 %v306
    %v487 = vunpack.c.h.b16 %v306
    %v488 = vunpack.c.l.b16 %v307
    %v489 = vunpack.c.h.b16 %v307
    %v490 = vunpack.c.l.b16 %v308
    %v491 = vunpack.c.h.b16 %v308
    %v492 = vunpack.c.l.b16 %v309
    %v493 = vunpack.c.h.b16 %v309
    %v494 = vunpack.c.l.b16 %v310
    %v495 = vunpack.c.h.b16 %v310
    %v496 = vunpack.c.l.b16 %v311
    %v497 = vunpack.c.h.b16 %v311
    %v498 = vunpack.c.l.b16 %v312
    %v499 = vunpack.c.h.b16 %v312
    %v500 = vunpack.c.l.b16 %v313
    %v501 = vunpack.c.h.b16 %v313
    %v502 = vunpack.c.l.b16 %v314
    %v503 = vunpack.c.h.b16 %v314
    %v504 = vunpack.c.l.b16 %v315
    %v505 = vunpack.c.h.b16 %v315
    %v506 = vunpack.c.l.b16 %v316
    %v507 = vunpack.c.h.b16 %v316
    %v508 = vunpack.c.l.b16 %v317
    %v509 = vunpack.c.h.b16 %v317
    %v510 = vunpack.c.l.b16 %v318
    %v511 = vunpack.c.h.b16 %v318
    %v512 = vunpack.c.l.b16 %v319
    %v513 = vunpack.c.h.b16 %v319
    %v514 = vunpack.c.l.b16 %v320
    %v515 = vunpack.c.h.b16 %v320
    %v516 = vunpack.c.l.b16 %v321
    %v517 = vunpack.c.h.b16 %v321
    %v518 = vunpack.c.l.b16 %v322
    %v519 = vunpack.c.h.b16 %v322
    %v520 = vunpack.c.l.b16 %v323
    %v521 = vunpack.c.h.b16 %v323
    %v522 = vunpack.c.l.b16 %v324
    %v523 = vunpack.c.h.b16 %v324
    %v524 = vunpack.c.l.b16 %v325
    %v525 = vunpack.c.h.b16 %v325
    %v526 = vunpack.c.l.b16 %v326
    %v527 = vunpack.c.h.b16 %v326
    %v528 = vunpack.c.l.b16 %v327
    %v529 = vunpack.c.h.b16 %v327
    %v530 = vunpack.c.l.b16 %v328
    %v531 = vunpack.c.h.b16 %v328
    %v532 = vunpack.c.l.b16 %v329
    %v533 = vunpack.c.h.b16 %v329
    %v534 = vunpack.c.l.b16 %v330
    %v535 = vunpack.c.h.b16 %v330
    %v536 = vunpack.c.l.b16 %v331
    %v537 = vunpack.c.h.b16 %v331
    %v538 = vunpack.c.l.b16 %v332
    %v539 = vunpack.c.h.b16 %v332
    %v540 = vunpack.c.l.b16 %v333
    %v541 = vunpack.c.h.b16 %v333
    %v542 = vunpack.c.l.b16 %v334
    %v543 = vunpack.c.h.b16 %v334
    %v544 = vunpack.c.l.b16 %v335
    %v545 = vunpack.c.h.b16 %v335
    %v546 = vunpack.c.l.b16 %v336
    %v547 = vunpack.c.h.b16 %v336
    %v548 = vunpack.c.l.b16 %v337
    %v549 = vunpack.c.h.b16 %v337
    %v550 = vunpack.c.l.b16 %v338
    %v551 = vunpack.c.h.b16 %v338
    %v552 = vunpack.c.l.b16 %v339
    %v553 = vunpack.c.h.b16 %v339
    %v554 = vpack.c.b16 %v430, %v426
    %v555 = vpack.c.b16 %v431, %v427
    %v556 = vpack.c.b16 %v432, %v428
    %v557 = vpack.c.b16 %v433, %v429
    %v558 = vpack.c.b16 %v438, %v434
    %v559 = vpack.c.b16 %v439, %v435
    %v560 = vpack.c.b16 %v440, %v436
    %v561 = vpack.c.b16 %v441, %v437
    %v562 = vpack.c.b16 %v446, %v442
    %v563 = vpack.c.b16 %v447, %v443
    %v564 = vpack.c.b16 %v448, %v444
    %v565 = vpack.c.b16 %v449, %v445
    %v566 = vpack.c.b16 %v454, %v450
    %v567 = vpack.c.b16 %v455, %v451
    %v568 = vpack.c.b16 %v456, %v452
    %v569 = vpack.c.b16 %v457, %v453
    %v570 = vpack.c.b16 %v462, %v458
    %v571 = vpack.c.b16 %v463, %v459
    %v572 = vpack.c.b16 %v464, %v460
    %v573 = vpack.c.b16 %v465, %v461
    %v574 = vpack.c.b16 %v470, %v466
    %v575 = vpack.c.b16 %v471, %v467
    %v576 = vpack.c.b16 %v472, %v468
    %v577 = vpack.c.b16 %v473, %v469
    %v578 = vpack.c.b16 %v478, %v474
    %v579 = vpack.c.b16 %v479, %v475
    %v580 = vpack.c.b16 %v480, %v476
    %v581 = vpack.c.b16 %v481, %v477
    %v582 = vpack.c.b16 %v486, %v482
    %v583 = vpack.c.b16 %v487, %v483
    %v584 = vpack.c.b16 %v488, %v484
    %v585 = vpack.c.b16 %v489, %v485
    %v586 = vpack.c.b16 %v494, %v490
    %v587 = vpack.c.b16 %v495, %v491
    %v588 = vpack.c.b16 %v496, %v492
    %v589 = vpack.c.b16 %v497, %v493
    %v590 = vpack.c.b16 %v502, %v498
    %v591 = vpack.c.b16 %v503, %v499
    %v592 = vpack.c.b16 %v504, %v500
    %v593 = vpack.c.b16 %v505, %v501
    %v594 = vpack.c.b16 %v510, %v506
    %v595 = vpack.c.b16 %v511, %v507
    %v596 = vpack.c.b16 %v512, %v508
    %v597 = vpack.c.b16 %v513, %v509
    %v598 = vpack.c.b16 %v518, %v514
    %v599 = vpack.c.b16 %v519, %v515
    %v600 = vpack.c.b16 %v520, %v516
    %v601 = vpack.c.b16 %v521, %v517
    %v602 = vpack.c.b16 %v526, %v522
    %v603 = vpack.c.b16 %v527, %v523
    %v604 = vpack.c.b16 %v528, %v524
    %v605 = vpack.c.b16 %v529, %v525
    %v606 = vpack.c.b16 %v534, %v530
    %v607 = vpack.c.b16 %v535, %v531
    %v608 = vpack.c.b16 %v536, %v532
    %v609 = vpack.c.b16 %v537, %v533
    %v610 = vpack.c.b16 %v542, %v538
    %v611 = vpack.c.b16 %v543, %v539
    %v612 = vpack.c.b16 %v544, %v540
    %v613 = vpack.c.b16 %v545, %v541
    %v614 = vpack.c.b16 %v550, %v546
    %v615 = vpack.c.b16 %v551, %v547
    %v616 = vpack.c.b16 %v552, %v548
    %v617 = vpack.c.b16 %v553, %v549
    %682 = vmatprep.subr.bf16.mxu0 %v555
    %683 = vmatpush1.bf16.msra.mxu0 %v554
    %684 = vmatprep.subr.bf16.mxu0 %v559
    %685 = vmatpush1.bf16.msra.mxu0 %v558
    %686 = vmatprep.subr.bf16.mxu0 %v563
    %687 = vmatpush1.bf16.msra.mxu0 %v562
    %688 = vmatprep.subr.bf16.mxu0 %v567
    %689 = vmatpush1.bf16.msra.mxu0 %v566
    %690 = vmatprep.subr.bf16.mxu0 %v571
    %691 = vmatpush1.bf16.msra.mxu0 %v570
    %692 = vmatprep.subr.bf16.mxu0 %v575
    %693 = vmatpush1.bf16.msra.mxu0 %v574
    %694 = vmatprep.subr.bf16.mxu0 %v579
    %695 = vmatpush1.bf16.msra.mxu0 %v578
    %696 = vmatprep.subr.bf16.mxu0 %v583
    %697 = vmatpush1.bf16.msra.mxu0 %v582
    %698 = vmatprep.subr.bf16.mxu0 %v587
    %699 = vmatpush1.bf16.msra.mxu0 %v586
    %700 = vmatprep.subr.bf16.mxu0 %v591
    %701 = vmatpush1.bf16.msra.mxu0 %v590
    %702 = vmatprep.subr.bf16.mxu0 %v595
    %703 = vmatpush1.bf16.msra.mxu0 %v594
    %704 = vmatprep.subr.bf16.mxu0 %v599
    %705 = vmatpush1.bf16.msra.mxu0 %v598
    %706 = vmatprep.subr.bf16.mxu0 %v603
    %707 = vmatpush1.bf16.msra.mxu0 %v602
    %708 = vmatprep.subr.bf16.mxu0 %v607
    %709 = vmatpush1.bf16.msra.mxu0 %v606
    %710 = vmatprep.subr.bf16.mxu0 %v611
    %711 = vmatpush1.bf16.msra.mxu0 %v610
    %712 = vmatprep.subr.bf16.mxu0 %v615
    %713 = vmatpush1.bf16.msra.mxu0 %v614
    %714 = vmatprep.mubr.bf16.mxu0 %v269
    %715 = vmatmul.mubr.bf16.gmra.mrb[0].mxu0 %v268
    %v716 = vpop.f32.mrb[0].mxu0
    %v717 = vadd.f32 %v345, %v716
    %v718 = vpop.f32.mrb[0].mxu0
    %v719 = vadd.f32 %v349, %v718
    %v720 = vpop.f32.mrb[0].mxu0
    %v721 = vadd.f32 %v345, %v720
    %v722 = vpop.f32.mrb[0].mxu0
    %v723 = vadd.f32 %v349, %v722
    %724 = vmatprep.mubr.bf16.mxu0 %v271
    %725 = vmatmul.mubr.bf16.gmra.mrb[0].mxu0 %v270
    %v726 = vpop.f32.mrb[0].mxu0
    %v727 = vadd.f32 %v345, %v726
    %v728 = vpop.f32.mrb[0].mxu0
    %v729 = vadd.f32 %v349, %v728
    %v730 = vpop.f32.mrb[0].mxu0
    %v731 = vadd.f32 %v345, %v730
    %v732 = vpop.f32.mrb[0].mxu0
    %v733 = vadd.f32 %v349, %v732
    %734 = vmatprep.mubr.bf16.mxu0 %v273
    %735 = vmatmul.mubr.bf16.gmra.mrb[0].mxu0 %v272
    %v736 = vpop.f32.mrb[0].mxu0
    %v737 = vadd.f32 %v345, %v736
    %v738 = vpop.f32.mrb[0].mxu0
    %v739 = vadd.f32 %v349, %v738
    %v740 = vpop.f32.mrb[0].mxu0
    %v741 = vadd.f32 %v345, %v740
    %v742 = vpop.f32.mrb[0].mxu0
    %v743 = vadd.f32 %v349, %v742
    %744 = vmatprep.mubr.bf16.mxu0 %v275
    %745 = vmatmul.mubr.bf16.gmra.mrb[0].mxu0 %v274
    %v746 = vpop.f32.mrb[0].mxu0
    %v747 = vadd.f32 %v345, %v746
    %v748 = vpop.f32.mrb[0].mxu0
    %v749 = vadd.f32 %v349, %v748
    %v750 = vpop.f32.mrb[0].mxu0
    %v751 = vadd.f32 %v345, %v750
    %v752 = vpop.f32.mrb[0].mxu0
    %v753 = vadd.f32 %v349, %v752
    %754 = vdwg.mxu0
    %755 = vmatprep.subr.bf16.mxu0 %v557
    %756 = vmatpush1.bf16.msra.mxu0 %v556
    %757 = vmatprep.subr.bf16.mxu0 %v561
    %758 = vmatpush1.bf16.msra.mxu0 %v560
    %759 = vmatprep.subr.bf16.mxu0 %v565
    %760 = vmatpush1.bf16.msra.mxu0 %v564
    %761 = vmatprep.subr.bf16.mxu0 %v569
    %762 = vmatpush1.bf16.msra.mxu0 %v568
    %763 = vmatprep.subr.bf16.mxu0 %v573
    %764 = vmatpush1.bf16.msra.mxu0 %v572
    %765 = vmatprep.subr.bf16.mxu0 %v577
    %766 = vmatpush1.bf16.msra.mxu0 %v576
    %767 = vmatprep.subr.bf16.mxu0 %v581
    %768 = vmatpush1.bf16.msra.mxu0 %v580
    %769 = vmatprep.subr.bf16.mxu0 %v585
    %770 = vmatpush1.bf16.msra.mxu0 %v584
    %771 = vmatprep.subr.bf16.mxu0 %v589
    %772 = vmatpush1.bf16.msra.mxu0 %v588
    %773 = vmatprep.subr.bf16.mxu0 %v593
    %774 = vmatpush1.bf16.msra.mxu0 %v592
    %775 = vmatprep.subr.bf16.mxu0 %v597
    %776 = vmatpush1.bf16.msra.mxu0 %v596
    %777 = vmatprep.subr.bf16.mxu0 %v601
    %778 = vmatpush1.bf16.msra.mxu0 %v600
    %779 = vmatprep.subr.bf16.mxu0 %v605
    %780 = vmatpush1.bf16.msra.mxu0 %v604
    %781 = vmatprep.subr.bf16.mxu0 %v609
    %782 = vmatpush1.bf16.msra.mxu0 %v608
    %783 = vmatprep.subr.bf16.mxu0 %v613
    %784 = vmatpush1.bf16.msra.mxu0 %v612
    %785 = vmatprep.subr.bf16.mxu0 %v617
    %786 = vmatpush1.bf16.msra.mxu0 %v616
    %787 = vmatprep.mubr.bf16.mxu0 %v269
    %788 = vmatmul.mubr.bf16.gmra.mrb[0].mxu0 %v268
    %v789 = vpop.f32.mrb[0].mxu0
    %v790 = vadd.f32 %v353, %v789
    %v791 = vpop.f32.mrb[0].mxu0
    %v792 = vadd.f32 %v357, %v791
    %v793 = vpop.f32.mrb[0].mxu0
    %v794 = vadd.f32 %v353, %v793
    %v795 = vpop.f32.mrb[0].mxu0
    %v796 = vadd.f32 %v357, %v795
    %797 = vmatprep.mubr.bf16.mxu0 %v271
    %798 = vmatmul.mubr.bf16.gmra.mrb[0].mxu0 %v270
    %v799 = vpop.f32.mrb[0].mxu0
    %v800 = vadd.f32 %v353, %v799
    %v801 = vpop.f32.mrb[0].mxu0
    %v802 = vadd.f32 %v357, %v801
    %v803 = vpop.f32.mrb[0].mxu0
    %v804 = vadd.f32 %v353, %v803
    %v805 = vpop.f32.mrb[0].mxu0
    %v806 = vadd.f32 %v357, %v805
    %807 = vmatprep.mubr.bf16.mxu0 %v273
    %808 = vmatmul.mubr.bf16.gmra.mrb[0].mxu0 %v272
    %v809 = vpop.f32.mrb[0].mxu0
    %v810 = vadd.f32 %v353, %v809
    %v811 = vpop.f32.mrb[0].mxu0
    %v812 = vadd.f32 %v357, %v811
    %v813 = vpop.f32.mrb[0].mxu0
    %v814 = vadd.f32 %v353, %v813
    %v815 = vpop.f32.mrb[0].mxu0
    %v816 = vadd.f32 %v357, %v815
    %817 = vmatprep.mubr.bf16.mxu0 %v275
    %818 = vmatmul.mubr.bf16.gmra.mrb[0].mxu0 %v274
    %v819 = vpop.f32.mrb[0].mxu0
    %v820 = vadd.f32 %v353, %v819
    %v821 = vpop.f32.mrb[0].mxu0
    %v822 = vadd.f32 %v357, %v821
    %v823 = vpop.f32.mrb[0].mxu0
    %v824 = vadd.f32 %v353, %v823
    %v825 = vpop.f32.mrb[0].mxu0
    %v826 = vadd.f32 %v357, %v825
    %827 = vdwg.mxu0
    %v828 = vmul.f32 %v717, 0.2
    %v829 = vmul.f32 %v719, 0.2
    %v830 = vmul.f32 %v790, 0.2
    %v831 = vmul.f32 %v792, 0.2
    %v832 = vmul.f32 %v721, 0.2
    %v833 = vmul.f32 %v723, 0.2
    %v834 = vmul.f32 %v794, 0.2
    %v835 = vmul.f32 %v796, 0.2
    %v836 = vmul.f32 %v727, 0.2
    %v837 = vmul.f32 %v729, 0.2
    %v838 = vmul.f32 %v800, 0.2
    %v839 = vmul.f32 %v802, 0.2
    %v840 = vmul.f32 %v731, 0.2
    %v841 = vmul.f32 %v733, 0.2
    %v842 = vmul.f32 %v804, 0.2
    %v843 = vmul.f32 %v806, 0.2
    %v844 = vmul.f32 %v737, 0.2
    %v845 = vmul.f32 %v739, 0.2
    %v846 = vmul.f32 %v810, 0.2
    %v847 = vmul.f32 %v812, 0.2
    %v848 = vmul.f32 %v741, 0.2
    %v849 = vmul.f32 %v743, 0.2
    %v850 = vmul.f32 %v814, 0.2
    %v851 = vmul.f32 %v816, 0.2
    %v852 = vmul.f32 %v747, 0.2
    %v853 = vmul.f32 %v749, 0.2
    %v854 = vmul.f32 %v820, 0.2
    %v855 = vmul.f32 %v822, 0.2
    %v856 = vmul.f32 %v751, 0.2
    %v857 = vmul.f32 %v753, 0.2
    %v858 = vmul.f32 %v824, 0.2
    %v859 = vmul.f32 %v826, 0.2
    %v860 = vmax.f32 %v717, %v828
    %v861 = vmax.f32 %v719, %v829
    %v862 = vmax.f32 %v790, %v830
    %v863 = vmax.f32 %v792, %v831
    %v864 = vmax.f32 %v721, %v832
    %v865 = vmax.f32 %v723, %v833
    %v866 = vmax.f32 %v794, %v834
    %v867 = vmax.f32 %v796, %v835
    %v868 = vmax.f32 %v727, %v836
    %v869 = vmax.f32 %v729, %v837
    %v870 = vmax.f32 %v800, %v838
    %v871 = vmax.f32 %v802, %v839
    %v872 = vmax.f32 %v731, %v840
    %v873 = vmax.f32 %v733, %v841
    %v874 = vmax.f32 %v804, %v842
    %v875 = vmax.f32 %v806, %v843
    %v876 = vmax.f32 %v737, %v844
    %v877 = vmax.f32 %v739, %v845
    %v878 = vmax.f32 %v810, %v846
    %v879 = vmax.f32 %v812, %v847
    %v880 = vmax.f32 %v741, %v848
    %v881 = vmax.f32 %v743, %v849
    %v882 = vmax.f32 %v814, %v850
    %v883 = vmax.f32 %v816, %v851
    %v884 = vmax.f32 %v747, %v852
    %v885 = vmax.f32 %v749, %v853
    %v886 = vmax.f32 %v820, %v854
    %v887 = vmax.f32 %v822, %v855
    %v888 = vmax.f32 %v751, %v856
    %v889 = vmax.f32 %v753, %v857
    %v890 = vmax.f32 %v824, %v858
    %v891 = vmax.f32 %v826, %v859
    %v892 = vld [vmem:[#allocation5] sm:$0xff]
    %v893 = vld [vmem:[#allocation5 + $0x8] sm:$0xff]
    %v894 = vld [vmem:[#allocation5 + $0x10] sm:$0xff]
    %v895 = vld [vmem:[#allocation5 + $0x18] sm:$0xff]
    %v896 = vld [vmem:[#allocation5 + $0x20] sm:$0xff]
    %v897 = vld [vmem:[#allocation5 + $0x28] sm:$0xff]
    %v898 = vld [vmem:[#allocation5 + $0x30] sm:$0xff]
    %v899 = vld [vmem:[#allocation5 + $0x38] sm:$0xff]
    %v900 = vld [vmem:[#allocation5 + $0x40] sm:$0xff]
    %v901 = vld [vmem:[#allocation5 + $0x48] sm:$0xff]
    %v902 = vld [vmem:[#allocation5 + $0x50] sm:$0xff]
    %v903 = vld [vmem:[#allocation5 + $0x58] sm:$0xff]
    %v904 = vld [vmem:[#allocation5 + $0x60] sm:$0xff]
    %v905 = vld [vmem:[#allocation5 + $0x68] sm:$0xff]
    %v906 = vld [vmem:[#allocation5 + $0x70] sm:$0xff]
    %v907 = vld [vmem:[#allocation5 + $0x78] sm:$0xff]
    %v908 = vld [vmem:[#allocation5 + $0x80] sm:$0xff]
    %v909 = vld [vmem:[#allocation5 + $0x88] sm:$0xff]
    %v910 = vld [vmem:[#allocation5 + $0x90] sm:$0xff]
    %v911 = vld [vmem:[#allocation5 + $0x98] sm:$0xff]
    %v912 = vld [vmem:[#allocation5 + $0xa0] sm:$0xff]
    %v913 = vld [vmem:[#allocation5 + $0xa8] sm:$0xff]
    %v914 = vld [vmem:[#allocation5 + $0xb0] sm:$0xff]
    %v915 = vld [vmem:[#allocation5 + $0xb8] sm:$0xff]
    %v916 = vld [vmem:[#allocation5 + $0xc0] sm:$0xff]
    %v917 = vld [vmem:[#allocation5 + $0xc8] sm:$0xff]
    %v918 = vld [vmem:[#allocation5 + $0xd0] sm:$0xff]
    %v919 = vld [vmem:[#allocation5 + $0xd8] sm:$0xff]
    %v920 = vld [vmem:[#allocation5 + $0xe0] sm:$0xff]
    %v921 = vld [vmem:[#allocation5 + $0xe8] sm:$0xff]
    %v922 = vld [vmem:[#allocation5 + $0xf0] sm:$0xff]
    %v923 = vld [vmem:[#allocation5 + $0xf8] sm:$0xff]
    %v924 = vld [vmem:[#allocation5 + $0x100] sm:$0xff]
    %v925 = vld [vmem:[#allocation5 + $0x108] sm:$0xff]
    %v926 = vld [vmem:[#allocation5 + $0x110] sm:$0xff]
    %v927 = vld [vmem:[#allocation5 + $0x118] sm:$0xff]
    %v928 = vld [vmem:[#allocation5 + $0x120] sm:$0xff]
    %v929 = vld [vmem:[#allocation5 + $0x128] sm:$0xff]
    %v930 = vld [vmem:[#allocation5 + $0x130] sm:$0xff]
    %v931 = vld [vmem:[#allocation5 + $0x138] sm:$0xff]
    %v932 = vld [vmem:[#allocation5 + $0x140] sm:$0xff]
    %v933 = vld [vmem:[#allocation5 + $0x148] sm:$0xff]
    %v934 = vld [vmem:[#allocation5 + $0x150] sm:$0xff]
    %v935 = vld [vmem:[#allocation5 + $0x158] sm:$0xff]
    %v936 = vld [vmem:[#allocation5 + $0x160] sm:$0xff]
    %v937 = vld [vmem:[#allocation5 + $0x168] sm:$0xff]
    %v938 = vld [vmem:[#allocation5 + $0x170] sm:$0xff]
    %v939 = vld [vmem:[#allocation5 + $0x178] sm:$0xff]
    %v940 = vld [vmem:[#allocation5 + $0x180] sm:$0xff]
    %v941 = vld [vmem:[#allocation5 + $0x188] sm:$0xff]
    %v942 = vld [vmem:[#allocation5 + $0x190] sm:$0xff]
    %v943 = vld [vmem:[#allocation5 + $0x198] sm:$0xff]
    %v944 = vld [vmem:[#allocation5 + $0x1a0] sm:$0xff]
    %v945 = vld [vmem:[#allocation5 + $0x1a8] sm:$0xff]
    %v946 = vld [vmem:[#allocation5 + $0x1b0] sm:$0xff]
    %v947 = vld [vmem:[#allocation5 + $0x1b8] sm:$0xff]
    %v948 = vld [vmem:[#allocation5 + $0x1c0] sm:$0xff]
    %v949 = vld [vmem:[#allocation5 + $0x1c8] sm:$0xff]
    %v950 = vld [vmem:[#allocation5 + $0x1d0] sm:$0xff]
    %v951 = vld [vmem:[#allocation5 + $0x1d8] sm:$0xff]
    %v952 = vld [vmem:[#allocation5 + $0x1e0] sm:$0xff]
    %v953 = vld [vmem:[#allocation5 + $0x1e8] sm:$0xff]
    %v954 = vld [vmem:[#allocation5 + $0x1f0] sm:$0xff]
    %v955 = vld [vmem:[#allocation5 + $0x1f8] sm:$0xff]
    %v956 = vld [vmem:[%s6] sm:$0x1]
    %v958 = vlaneseq
    %v959 = vshrl.u32 %v958, 7
    %v960 = vsub.s32 0, %v959
    %v961 = vrot.slane %v956, %v960
    %963 = vmatprep.subr.mxu0 0.0
    %964 = vmatpush1.msra.mxu0 %v892
    %965 = vmatprep.subr.mxu0 0.0
    %966 = vmatpush1.msra.mxu0 %v893
    %967 = vmatprep.subr.mxu0 0.0
    %968 = vmatpush1.msra.mxu0 %v894
    %969 = vmatprep.subr.mxu0 0.0
    %970 = vmatpush1.msra.mxu0 %v895
    %971 = vmatprep.subr.mxu0 0.0
    %972 = vmatpush1.msra.mxu0 %v896
    %973 = vmatprep.subr.mxu0 0.0
    %974 = vmatpush1.msra.mxu0 %v897
    %975 = vmatprep.subr.mxu0 0.0
    %976 = vmatpush1.msra.mxu0 %v898
    %977 = vmatprep.subr.mxu0 0.0
    %978 = vmatpush1.msra.mxu0 %v899
    %979 = vmatprep.subr.mxu0 0.0
    %980 = vmatpush1.msra.mxu0 %v900
    %981 = vmatprep.subr.mxu0 0.0
    %982 = vmatpush1.msra.mxu0 %v901
    %983 = vmatprep.subr.mxu0 0.0
    %984 = vmatpush1.msra.mxu0 %v902
    %985 = vmatprep.subr.mxu0 0.0
    %986 = vmatpush1.msra.mxu0 %v903
    %987 = vmatprep.subr.mxu0 0.0
    %988 = vmatpush1.msra.mxu0 %v904
    %989 = vmatprep.subr.mxu0 0.0
    %990 = vmatpush1.msra.mxu0 %v905
    %991 = vmatprep.subr.mxu0 0.0
    %992 = vmatpush1.msra.mxu0 %v906
    %993 = vmatprep.subr.mxu0 0.0
    %994 = vmatpush1.msra.mxu0 %v907
    %995 = vmatprep.subr.mxu0 0.0
    %996 = vmatpush1.msra.mxu0 %v908
    %997 = vmatprep.subr.mxu0 0.0
    %998 = vmatpush1.msra.mxu0 %v909
    %999 = vmatprep.subr.mxu0 0.0
    %1000 = vmatpush1.msra.mxu0 %v910
    %1001 = vmatprep.subr.mxu0 0.0
    %1002 = vmatpush1.msra.mxu0 %v911
    %1003 = vmatprep.subr.mxu0 0.0
    %1004 = vmatpush1.msra.mxu0 %v912
    %1005 = vmatprep.subr.mxu0 0.0
    %1006 = vmatpush1.msra.mxu0 %v913
    %1007 = vmatprep.subr.mxu0 0.0
    %1008 = vmatpush1.msra.mxu0 %v914
    %1009 = vmatprep.subr.mxu0 0.0
    %1010 = vmatpush1.msra.mxu0 %v915
    %1011 = vmatprep.subr.mxu0 0.0
    %1012 = vmatpush1.msra.mxu0 %v916
    %1013 = vmatprep.subr.mxu0 0.0
    %1014 = vmatpush1.msra.mxu0 %v917
    %1015 = vmatprep.subr.mxu0 0.0
    %1016 = vmatpush1.msra.mxu0 %v918
    %1017 = vmatprep.subr.mxu0 0.0
    %1018 = vmatpush1.msra.mxu0 %v919
    %1019 = vmatprep.subr.mxu0 0.0
    %1020 = vmatpush1.msra.mxu0 %v920
    %1021 = vmatprep.subr.mxu0 0.0
    %1022 = vmatpush1.msra.mxu0 %v921
    %1023 = vmatprep.subr.mxu0 0.0
    %1024 = vmatpush1.msra.mxu0 %v922
    %1025 = vmatprep.subr.mxu0 0.0
    %1026 = vmatpush1.msra.mxu0 %v923
    %1027 = vmatprep.mubr.f32.mxu0 %v861
    %1028 = vmatmul.mubr.f32.gmra.mrb[0].mxu0 %v860
    %v1029 = vpop.f32.mrb[0].mxu0
    %v1030 = vadd.f32 %v961, %v1029
    %v1031 = vpop.f32.mrb[0].mxu0
    %1032 = vmatprep.mubr.f32.mxu0 %v865
    %1033 = vmatmul.mubr.f32.gmra.mrb[0].mxu0 %v864
    %v1034 = vpop.f32.mrb[0].mxu0
    %v1035 = vadd.f32 %v961, %v1034
    %v1036 = vpop.f32.mrb[0].mxu0
    %1037 = vmatprep.mubr.f32.mxu0 %v869
    %1038 = vmatmul.mubr.f32.gmra.mrb[0].mxu0 %v868
    %v1039 = vpop.f32.mrb[0].mxu0
    %v1040 = vadd.f32 %v961, %v1039
    %v1041 = vpop.f32.mrb[0].mxu0
    %1042 = vmatprep.mubr.f32.mxu0 %v873
    %1043 = vmatmul.mubr.f32.gmra.mrb[0].mxu0 %v872
    %v1044 = vpop.f32.mrb[0].mxu0
    %v1045 = vadd.f32 %v961, %v1044
    %v1046 = vpop.f32.mrb[0].mxu0
    %1047 = vmatprep.mubr.f32.mxu0 %v877
    %1048 = vmatmul.mubr.f32.gmra.mrb[0].mxu0 %v876
    %v1049 = vpop.f32.mrb[0].mxu0
    %v1050 = vadd.f32 %v961, %v1049
    %v1051 = vpop.f32.mrb[0].mxu0
    %1052 = vmatprep.mubr.f32.mxu0 %v881
    %1053 = vmatmul.mubr.f32.gmra.mrb[0].mxu0 %v880
    %v1054 = vpop.f32.mrb[0].mxu0
    %v1055 = vadd.f32 %v961, %v1054
    %v1056 = vpop.f32.mrb[0].mxu0
    %1057 = vmatprep.mubr.f32.mxu0 %v885
    %1058 = vmatmul.mubr.f32.gmra.mrb[0].mxu0 %v884
    %v1059 = vpop.f32.mrb[0].mxu0
    %v1060 = vadd.f32 %v961, %v1059
    %v1061 = vpop.f32.mrb[0].mxu0
    %1062 = vmatprep.mubr.f32.mxu0 %v889
    %1063 = vmatmul.mubr.f32.gmra.mrb[0].mxu0 %v888
    %v1064 = vpop.f32.mrb[0].mxu0
    %v1065 = vadd.f32 %v961, %v1064
    %v1066 = vpop.f32.mrb[0].mxu0
    %1067 = vdwg.mxu0
    %1068 = vmatprep.subr.mxu0 0.0
    %1069 = vmatpush1.msra.mxu0 %v924
    %1070 = vmatprep.subr.mxu0 0.0
    %1071 = vmatpush1.msra.mxu0 %v925
    %1072 = vmatprep.subr.mxu0 0.0
    %1073 = vmatpush1.msra.mxu0 %v926
    %1074 = vmatprep.subr.mxu0 0.0
    %1075 = vmatpush1.msra.mxu0 %v927
    %1076 = vmatprep.subr.mxu0 0.0
    %1077 = vmatpush1.msra.mxu0 %v928
    %1078 = vmatprep.subr.mxu0 0.0
    %1079 = vmatpush1.msra.mxu0 %v929
    %1080 = vmatprep.subr.mxu0 0.0
    %1081 = vmatpush1.msra.mxu0 %v930
    %1082 = vmatprep.subr.mxu0 0.0
    %1083 = vmatpush1.msra.mxu0 %v931
    %1084 = vmatprep.subr.mxu0 0.0
    %1085 = vmatpush1.msra.mxu0 %v932
    %1086 = vmatprep.subr.mxu0 0.0
    %1087 = vmatpush1.msra.mxu0 %v933
    %1088 = vmatprep.subr.mxu0 0.0
    %1089 = vmatpush1.msra.mxu0 %v934
    %1090 = vmatprep.subr.mxu0 0.0
    %1091 = vmatpush1.msra.mxu0 %v935
    %1092 = vmatprep.subr.mxu0 0.0
    %1093 = vmatpush1.msra.mxu0 %v936
    %1094 = vmatprep.subr.mxu0 0.0
    %1095 = vmatpush1.msra.mxu0 %v937
    %1096 = vmatprep.subr.mxu0 0.0
    %1097 = vmatpush1.msra.mxu0 %v938
    %1098 = vmatprep.subr.mxu0 0.0
    %1099 = vmatpush1.msra.mxu0 %v939
    %1100 = vmatprep.subr.mxu0 0.0
    %1101 = vmatpush1.msra.mxu0 %v940
    %1102 = vmatprep.subr.mxu0 0.0
    %1103 = vmatpush1.msra.mxu0 %v941
    %1104 = vmatprep.subr.mxu0 0.0
    %1105 = vmatpush1.msra.mxu0 %v942
    %1106 = vmatprep.subr.mxu0 0.0
    %1107 = vmatpush1.msra.mxu0 %v943
    %1108 = vmatprep.subr.mxu0 0.0
    %1109 = vmatpush1.msra.mxu0 %v944
    %1110 = vmatprep.subr.mxu0 0.0
    %1111 = vmatpush1.msra.mxu0 %v945
    %1112 = vmatprep.subr.mxu0 0.0
    %1113 = vmatpush1.msra.mxu0 %v946
    %1114 = vmatprep.subr.mxu0 0.0
    %1115 = vmatpush1.msra.mxu0 %v947
    %1116 = vmatprep.subr.mxu0 0.0
    %1117 = vmatpush1.msra.mxu0 %v948
    %1118 = vmatprep.subr.mxu0 0.0
    %1119 = vmatpush1.msra.mxu0 %v949
    %1120 = vmatprep.subr.mxu0 0.0
    %1121 = vmatpush1.msra.mxu0 %v950
    %1122 = vmatprep.subr.mxu0 0.0
    %1123 = vmatpush1.msra.mxu0 %v951
    %1124 = vmatprep.subr.mxu0 0.0
    %1125 = vmatpush1.msra.mxu0 %v952
    %1126 = vmatprep.subr.mxu0 0.0
    %1127 = vmatpush1.msra.mxu0 %v953
    %1128 = vmatprep.subr.mxu0 0.0
    %1129 = vmatpush1.msra.mxu0 %v954
    %1130 = vmatprep.subr.mxu0 0.0
    %1131 = vmatpush1.msra.mxu0 %v955
    %1132 = vmatprep.mubr.f32.mxu0 %v863
    %1133 = vmatmul.mubr.f32.gmra.mrb[0].mxu0 %v862
    %v1134 = vpop.f32.mrb[0].mxu0
    %v1135 = vadd.f32 %v1030, %v1134
    %v1136 = vpop.f32.mrb[0].mxu0
    %1137 = vmatprep.mubr.f32.mxu0 %v867
    %1138 = vmatmul.mubr.f32.gmra.mrb[0].mxu0 %v866
    %v1139 = vpop.f32.mrb[0].mxu0
    %v1140 = vadd.f32 %v1035, %v1139
    %v1141 = vpop.f32.mrb[0].mxu0
    %1142 = vmatprep.mubr.f32.mxu0 %v871
    %1143 = vmatmul.mubr.f32.gmra.mrb[0].mxu0 %v870
    %v1144 = vpop.f32.mrb[0].mxu0
    %v1145 = vadd.f32 %v1040, %v1144
    %v1146 = vpop.f32.mrb[0].mxu0
    %1147 = vmatprep.mubr.f32.mxu0 %v875
    %1148 = vmatmul.mubr.f32.gmra.mrb[0].mxu0 %v874
    %v1149 = vpop.f32.mrb[0].mxu0
    %v1150 = vadd.f32 %v1045, %v1149
    %v1151 = vpop.f32.mrb[0].mxu0
    %1152 = vmatprep.mubr.f32.mxu0 %v879
    %1153 = vmatmul.mubr.f32.gmra.mrb[0].mxu0 %v878
    %v1154 = vpop.f32.mrb[0].mxu0
    %v1155 = vadd.f32 %v1050, %v1154
    %v1156 = vpop.f32.mrb[0].mxu0
    %1157 = vmatprep.mubr.f32.mxu0 %v883
    %1158 = vmatmul.mubr.f32.gmra.mrb[0].mxu0 %v882
    %v1159 = vpop.f32.mrb[0].mxu0
    %v1160 = vadd.f32 %v1055, %v1159
    %v1161 = vpop.f32.mrb[0].mxu0
    %1162 = vmatprep.mubr.f32.mxu0 %v887
    %1163 = vmatmul.mubr.f32.gmra.mrb[0].mxu0 %v886
    %v1164 = vpop.f32.mrb[0].mxu0
    %v1165 = vadd.f32 %v1060, %v1164
    %v1166 = vpop.f32.mrb[0].mxu0
    %1167 = vmatprep.mubr.f32.mxu0 %v891
    %1168 = vmatmul.mubr.f32.gmra.mrb[0].mxu0 %v890
    %v1169 = vpop.f32.mrb[0].mxu0
    %v1170 = vadd.f32 %v1065, %v1169
    %v1171 = vpop.f32.mrb[0].mxu0
    %1172 = vdwg.mxu0
    %1173 = vst [vmem:[#allocation7] sm:$0xff] %v1135
    %1174 = vst [vmem:[#allocation7 + $0x8] sm:$0xff] %v1140
    %1175 = vst [vmem:[#allocation7 + $0x10] sm:$0xff] %v1145
    %1176 = vst [vmem:[#allocation7 + $0x18] sm:$0xff] %v1150
    %1177 = vst [vmem:[#allocation7 + $0x20] sm:$0xff] %v1155
    %1178 = vst [vmem:[#allocation7 + $0x28] sm:$0xff] %v1160
    %1179 = vst [vmem:[#allocation7 + $0x30] sm:$0xff] %v1165
    %1180 = vst [vmem:[#allocation7 + $0x38] sm:$0xff] %v1170
    // Predicated region
    $region38: #{tpu_custom_call.1} parent=1 // pred_check
      _
    $region39: #{tpu_custom_call.1} parent=1 // pred_check_branch
      %1182 = sbr.rel (0) target = $region41
    $region40: #{tpu_custom_call.1} parent=1 // pred_region
      %s1184 = ssub.s32 1024, 1024
      %1185 = vsyncadd [#allocation4], %s1184
      %s1186 = sshll.u32 [#allocation7], 4
      %s1187 = int_to_ptr.vmem [resolvable:$true] %s1186
      %1192 = dma.vmem_to_hbm [thread:$0]  %s1187, 1024, %s7, [#allocation4], 128, 128, 8
    $region41: #{tpu_custom_call.1} parent=1 // pred_fallthru
      _
    // Predicated region
    $region42: #{tpu_custom_call.1} parent=1 // pred_check
      _
    $region43: #{tpu_custom_call.1} parent=1 // pred_check_branch
      %1194 = sbr.rel (0) target = $region45
    $region44: #{tpu_custom_call.1} parent=1 // pred_region
      %1195 = dma.done [#allocation4], 1024
    $region45: #{tpu_custom_call.1} parent=1 // pred_fallthru
      _
    %1196 = vsyncpa [#allocation3], 1
    %1197 = vsyncpa [#allocation6], 1
    %1198 = vsyncpa [#allocation4], 1

</llo_original>
